<compile_context>
chip_gen: v6e
topology: v6e:2x2x1
jax: 0.10.0
libtpu: 0.0.40
codegen_flags: <defaults>
</compile_context>

<pallas_src>
import jax
import jax.numpy as jnp
from jax import lax
from jax.experimental import pallas as pl
from jax.experimental.pallas import tpu as pltpu

_LANES = 128
_SUBLANES = 8
_CHUNK_ROWS = 64          # rows per inner-loop step (8 native (8,128) groups)
_MIN_GRID = 4             # aim for >= 4 parallel grid steps (v7x: 2 TCs)


def _make_partials_kernel(tile_rows):
    """Per-block partial sums of squared / absolute error.

    Block inputs: (tile_rows, 128) in native dtype.
    Block output: (1, 16, 128) f32 — sq partials in sublanes 0..7, abs in 8..15.
    """
    n_chunks = tile_rows // _CHUNK_ROWS
    groups = _CHUNK_ROWS // _SUBLANES

    def kernel(p_ref, t_ref, out_ref):
        def body(g, carry):
            sq_acc, abs_acc = carry
            r = pl.multiple_of(g * _CHUNK_ROWS, _CHUNK_ROWS)
            p = p_ref[pl.ds(r, _CHUNK_ROWS), :].astype(jnp.float32)
            t = t_ref[pl.ds(r, _CHUNK_ROWS), :].astype(jnp.float32)
            d = p - t
            # Split sublane axis along native (8,128) tile boundaries and sum
            # across vregs (leading axis) -> pure per-vreg VPU adds, no XLU.
            d3 = d.reshape(groups, _SUBLANES, _LANES)
            sq_acc = sq_acc + jnp.sum(d3 * d3, axis=0)
            abs_acc = abs_acc + jnp.sum(jnp.abs(d3), axis=0)
            return sq_acc, abs_acc

        zeros = jnp.zeros((_SUBLANES, _LANES), jnp.float32)
        sq_acc, abs_acc = lax.fori_loop(0, n_chunks, body, (zeros, zeros))
        out_ref[0, 0:_SUBLANES, :] = sq_acc
        out_ref[0, _SUBLANES:2 * _SUBLANES, :] = abs_acc

    return kernel


def _choose_tile(rows, tile_rows):
    """Pick a tile (multiple of _CHUNK_ROWS) giving ~>= _MIN_GRID grid steps."""
    tile_cap = max(_CHUNK_ROWS, (tile_rows // _CHUNK_ROWS) * _CHUNK_ROWS)
    target = max(_CHUNK_ROWS,
                 (pl.cdiv(rows, _MIN_GRID) // _CHUNK_ROWS) * _CHUNK_ROWS)
    return min(tile_cap, target)


def _partial_sums(p2, t2, tile):
    """Sum of squared / absolute error over an exact-multiple-of-tile slab."""
    rows = p2.shape[0]
    grid_n = rows // tile
    assert grid_n * tile == rows

    out = pl.pallas_call(
        _make_partials_kernel(tile),
        out_shape=jax.ShapeDtypeStruct((grid_n, 2 * _SUBLANES, _LANES),
                                       jnp.float32),
        grid_spec=pltpu.PrefetchScalarGridSpec(
            num_scalar_prefetch=0,
            grid=(grid_n,),
            in_specs=[
                pl.BlockSpec((tile, _LANES), lambda i: (i, 0)),
                pl.BlockSpec((tile, _LANES), lambda i: (i, 0)),
            ],
            out_specs=pl.BlockSpec((1, 2 * _SUBLANES, _LANES),
                                   lambda i: (i, 0, 0)),
        ),
        compiler_params=pltpu.CompilerParams(
            # No carried state -> keep "parallel" so v7x shards across both TCs.
            dimension_semantics=("parallel",),
        ),
    )(p2, t2)

    sq_sum = jnp.sum(out[:, :_SUBLANES, :])
    abs_sum = jnp.sum(out[:, _SUBLANES:, :])
    return sq_sum, abs_sum


def multiple_loss(predict, target, weights=(0.5, 0.5), tile_rows=4096,
                  min_kernel_rows=1024):
    """MultipleLoss([MSELoss(), L1Loss()], weights) forward pass."""
    assert predict.shape == target.shape
    n_true = predict.size
    assert n_true > 0

    p_flat = predict.reshape(-1)
    t_flat = target.reshape(-1)

    rows = n_true // _LANES

    if rows < min_kernel_rows:
        # Small-input fast path: XLA's fused elementwise+reduce is already at
        # roofline; pallas_call fixed cost would dominate.
        d = p_flat.astype(jnp.float32) - t_flat.astype(jnp.float32)
        sq_sum = jnp.sum(d * d)
        abs_sum = jnp.sum(jnp.abs(d))
    else:
        tile = _choose_tile(rows, tile_rows)
        grid_n = rows // tile
        rows_main = grid_n * tile
        n_main = rows_main * _LANES

        if n_main == n_true:          # common case: no slice, no copy
            p2 = p_flat.reshape(rows_main, _LANES)
            t2 = t_flat.reshape(rows_main, _LANES)
        else:                          # exact-multiple-of-tile prefix only
            p2 = p_flat[:n_main].reshape(rows_main, _LANES)
            t2 = t_flat[:n_main].reshape(rows_main, _LANES)

        sq_sum, abs_sum = _partial_sums(p2, t2, tile)

        if n_main < n_true:
            # Remainder (< tile rows + <128-lane tail) folded in with plain JAX,
            # so the kernel never needs a ragged-row mask.
            dt = (p_flat[n_main:].astype(jnp.float32)
                  - t_flat[n_main:].astype(jnp.float32))
            sq_sum = sq_sum + jnp.sum(dt * dt)
            abs_sum = abs_sum + jnp.sum(jnp.abs(dt))

    inv_n = 1.0 / float(n_true)
    mse = sq_sum * inv_n
    mae = abs_sum * inv_n
    return jnp.float32(weights[0]) * mse + jnp.float32(weights[1]) * mae


def multiple_loss_ref(predict, target, weights=(0.5, 0.5)):
    p = predict.astype(jnp.float32)
    t = target.astype(jnp.float32)
    mse = jnp.mean((p - t) ** 2)
    mae = jnp.mean(jnp.abs(p - t))
    return weights[0] * mse + weights[1] * mae


if __name__ == "__main__":
    key = jax.random.PRNGKey(0)
    k1, k2, k3, k4 = jax.random.split(key, 4)

    # Deterministic "module init": 2 sub-losses (MSE, L1) -> weight = 1/2 each.
    weights = (0.5, 0.5)

    # Small NCHW demo shape (uses the fused-XLA fast path).
    p_small = jax.random.normal(k1, (2, 4, 16, 16), dtype=jnp.float32)
    t_small = jax.random.normal(k2, (2, 4, 16, 16), dtype=jnp.float32)
    out_small = jax.block_until_ready(multiple_loss(p_small, t_small, weights))
    ref_small = multiple_loss_ref(p_small, t_small, weights)
    assert jnp.allclose(out_small, ref_small, rtol=1e-5, atol=1e-5), (
        out_small, ref_small)

    # HSI-sized tensor large enough to exercise the Pallas streaming kernel
    # (and the mask-free remainder path).
    p_big = jax.random.normal(k3, (2, 31, 96, 96), dtype=jnp.float32)
    t_big = jax.random.normal(k4, (2, 31, 96, 96), dtype=jnp.float32)
    out_big = jax.block_until_ready(multiple_loss(p_big, t_big, weights))
    ref_big = multiple_loss_ref(p_big, t_big, weights)
    assert jnp.allclose(out_big, ref_big, rtol=1e-4, atol=1e-5), (
        out_big, ref_big)

    print("KERNEL_OK")
</pallas_src>

<mosaic_0001>
module attributes {stable_mosaic.version = 11 : i64} {
  func.func @kernel(%arg0: i32, %arg1: memref<1088x128xf32, #tpu.memory_space<vmem>>, %arg2: memref<1088x128xf32, #tpu.memory_space<vmem>>, %arg3: memref<1x16x128xf32, #tpu.memory_space<vmem>>) attributes {dimension_semantics = [#tpu.dimension_semantics<parallel>], iteration_bounds = array<i64: 4>, scalar_prefetch = 0 : i64, scratch_operands = 0 : i64, tpu.core_type = #tpu.core_type<tc>, window_params = [{transform_indices = @transform_0, window_bounds = array<i64: 1088, 128>}, {transform_indices = @transform_1, window_bounds = array<i64: 1088, 128>}, {transform_indices = @transform_2, window_bounds = array<i64: 1, 16, 128>}]} {
    %cst = arith.constant 0.000000e+00 : f32
    %0 = vector.broadcast %cst : f32 to vector<8x128xf32>
    %c0_i32 = arith.constant 0 : i32
    %c17_i32 = arith.constant 17 : i32
    %1 = arith.addi %c0_i32, %c17_i32 : i32
    %c1_i32 = arith.constant 1 : i32
    %2:2 = scf.for %arg4 = %c0_i32 to %1 step %c1_i32 iter_args(%arg5 = %0, %arg6 = %0) -> (vector<8x128xf32>, vector<8x128xf32>)  : i32 {
      %c64_i32 = arith.constant 64 : i32
      %9 = arith.muli %arg4, %c64_i32 : i32
      %10 = tpu.assume_multiple %9, 64 : i32
      %11 = arith.index_cast %10 : i32 to index
      %c0_5 = arith.constant 0 : index
      %12 = vector.load %arg1[%11, %c0_5] : memref<1088x128xf32, #tpu.memory_space<vmem>>, vector<64x128xf32>
      %13 = arith.index_cast %10 : i32 to index
      %c0_6 = arith.constant 0 : index
      %14 = vector.load %arg2[%13, %c0_6] : memref<1088x128xf32, #tpu.memory_space<vmem>>, vector<64x128xf32>
      %15 = arith.subf %12, %14 : vector<64x128xf32>
      %16 = vector.shape_cast %15 : vector<64x128xf32> to vector<8x8x128xf32>
      %17 = arith.mulf %16, %16 : vector<8x8x128xf32>
      %cst_7 = arith.constant dense<0.000000e+00> : vector<8x128xf32>
      %18 = vector.multi_reduction <add>, %17, %cst_7 [0] : vector<8x8x128xf32> to vector<8x128xf32>
      %19 = arith.addf %arg5, %18 : vector<8x128xf32>
      %20 = math.absf %16 : vector<8x8x128xf32>
      %cst_8 = arith.constant dense<0.000000e+00> : vector<8x128xf32>
      %21 = vector.multi_reduction <add>, %20, %cst_8 [0] : vector<8x8x128xf32> to vector<8x128xf32>
      %22 = arith.addf %arg6, %21 : vector<8x128xf32>
      scf.yield %19, %22 : vector<8x128xf32>, vector<8x128xf32>
    }
    %c17_i32_0 = arith.constant 17 : i32
    %c0 = arith.constant 0 : index
    %c0_1 = arith.constant 0 : index
    %c0_2 = arith.constant 0 : index
    %3 = vector.load %arg3[%c0, %c0_1, %c0_2] : memref<1x16x128xf32, #tpu.memory_space<vmem>>, vector<1x8x128xf32>
    %4 = vector.shape_cast %3 : vector<1x8x128xf32> to vector<8x128xf32>
    %5 = vector.shape_cast %2#0 : vector<8x128xf32> to vector<1x8x128xf32>
    tpu.vector_store %arg3[%c0, %c0_1, %c0_2], %5 {strides = array<i32>} : memref<1x16x128xf32, #tpu.memory_space<vmem>>, vector<1x8x128xf32>,
    %c0_3 = arith.constant 0 : index
    %c8 = arith.constant 8 : index
    %c0_4 = arith.constant 0 : index
    %6 = vector.load %arg3[%c0_3, %c8, %c0_4] : memref<1x16x128xf32, #tpu.memory_space<vmem>>, vector<1x8x128xf32>
    %7 = vector.shape_cast %6 : vector<1x8x128xf32> to vector<8x128xf32>
    %8 = vector.shape_cast %2#1 : vector<8x128xf32> to vector<1x8x128xf32>
    tpu.vector_store %arg3[%c0_3, %c8, %c0_4], %8 {strides = array<i32>} : memref<1x16x128xf32, #tpu.memory_space<vmem>>, vector<1x8x128xf32>,
    return
  }
  func.func @transform_0(%arg0: i32) -> (i32, i32) {
    %c0_i32 = arith.constant 0 : i32
    %c0_i32_0 = arith.constant 0 : i32
    return %arg0, %c0_i32 : i32, i32
  }
  func.func @transform_1(%arg0: i32) -> (i32, i32) {
    %c0_i32 = arith.constant 0 : i32
    %c0_i32_0 = arith.constant 0 : i32
    return %arg0, %c0_i32 : i32, i32
  }
  func.func @transform_2(%arg0: i32) -> (i32, i32, i32) {
    %c0_i32 = arith.constant 0 : i32
    %c0_i32_0 = arith.constant 0 : i32
    %c0_i32_1 = arith.constant 0 : i32
    return %arg0, %c0_i32, %c0_i32_0 : i32, i32, i32
  }
}

</mosaic_0001>

<llo_original>
// kernel: tpu_custom_call.1
$region0: #{tpu_custom_call.1}
  #allocation0 [shape = 'u32[]', space=smem, size = 0x4, offset = 0x4, fixed_abs, tag = 'smem constant byte address 0x4 - core index']
  #allocation1 [shape = 'u32[144,128]{1,0:T(1,128)}', space=vmem, size = 0x12000, scoped, tag = 'internal scratch']
  %s0 = inlined_call_operand.hbm [shape: f32[4352,128], index: 0, kind: input, shape index: {}]
  %s1 = inlined_call_operand.hbm [shape: f32[4352,128], index: 1, kind: input, shape index: {}]
  %s2 = inlined_call_operand.hbm [shape: f32[4,16,128], index: 2, kind: output, shape index: {}]
  %s3 = sld [smem:[#allocation0]]
  $region56: #{tpu_custom_call.1} parent=0
    _
  %s5 = ssub.s32 1, %s3
  %s6 = scalar_select 0, %s5, %s3
  $region1: #{tpu_custom_call.1} parent=0
    #allocation2 [shape = 'u8[1114112]{0}', space=vmem, size = 0x110000, scoped, tag = 'input window, operand 0']
    #allocation3 [shape = 's32[2]{0}', space=sflag, size = 0x8, scoped, tag = 'scoped memory for tpu_custom_call.1']
    #allocation4 [shape = 's32[2]{0}', space=sflag, size = 0x8, scoped, tag = 'scoped memory for tpu_custom_call.1']
    #allocation5 [shape = 'u8[1114112]{0}', space=vmem, size = 0x110000, scoped, tag = 'input window, operand 1']
    #allocation6 [shape = 's32[2]{0}', space=sflag, size = 0x8, scoped, tag = 'scoped memory for tpu_custom_call.1']
    #allocation7 [shape = 'u8[16384]{0}', space=vmem, size = 0x4000, scoped, tag = 'output window, operand 0']
    %7 = vsyncpa [#allocation3], 0
    %s8 = scalar_lea.sflag [#allocation3], 1
    %9 = vsyncpa %s8, 0
    %10 = vsyncpa [#allocation6], 0
    %s11 = scalar_lea.sflag [#allocation6], 1
    %12 = vsyncpa %s11, 0
    %13 = vsyncpa [#allocation4], 0
    %s14 = scalar_lea.sflag [#allocation4], 1
    %15 = vsyncpa %s14, 0
    loop: start=0, step=1, limit=6
    $region2: #{tpu_custom_call.1} parent=1 // loop_pre_header
      _
    $region3: #{tpu_custom_call.1} parent=1 // loop_header
      %s17 = sphi 0, %s21
      %p18 = scmp.ge.s32.totalorder %s17, 6
      %s27 = sphi 0, %s29
      %s30 = sphi 0, %s27
      %s31 = sphi 0, %s30
      %s47 = sphi 0, %s31
      %s53 = sphi 0, %s55
      %s56 = sphi 0, %s53
      %s57 = sphi 0, %s56
      %s73 = sphi 0, %s57
      %s79 = sphi 0, %s81
      %s82 = sphi 0, %s79
      %s83 = sphi 0, %s82
      %s99 = sphi 0, %s83
    $region4: #{tpu_custom_call.1} parent=1 // loop_header_branch
      %20 = sbr.rel (%p18) target = $region8
    $region5: #{tpu_custom_call.1} parent=1 // loop_body
      %s22 = ssub.s32 %s17, 1
      %s23 = ssub.s32 %s17, 2
      %s24 = sadd.s32 %s17, 1
      %s25 = ssub.s32 %s17, %s24
      %p26 = scmp.eq.s32.totalorder %s25, 0
      %s28 = sadd.s32 %s27, 1
      %s29 = scalar_select %p26, %s27, %s28
      %p32 = pneg %p26
      %p33 = scmp.eq.s32.totalorder %s17, 3
      %p34 = por %p32, %p33
      %p35 = scmp.ne.s32.totalorder %s27, %s30
      %p36 = scmp.eq.s32.totalorder %s17, 0
      %p37 = por %p35, %p36
      %p38 = scmp.ne.s32.totalorder %s27, %s30
      %p39 = scmp.eq.s32.totalorder %s22, 3
      %p40 = por %p38, %p39
      %p41 = scmp.ne.s32.totalorder %s30, %s31
      %p42 = scmp.eq.s32.totalorder %s22, 0
      %p43 = por %p41, %p42
      %p44 = scmp.ne.s32.totalorder %s30, %s31
      %p45 = scmp.eq.s32.totalorder %s23, 3
      %p46 = por %p44, %p45
      %p48 = scmp.ne.s32.totalorder %s31, %s47
      %p49 = scmp.eq.s32.totalorder %s23, 0
      %p50 = por %p48, %p49
      %s51 = ssub.s32 %s17, %s24
      %p52 = scmp.eq.s32.totalorder %s51, 0
      %s54 = sadd.s32 %s53, 1
      %s55 = scalar_select %p52, %s53, %s54
      %p58 = pneg %p52
      %p59 = scmp.eq.s32.totalorder %s17, 3
      %p60 = por %p58, %p59
      %p61 = scmp.ne.s32.totalorder %s53, %s56
      %p62 = scmp.eq.s32.totalorder %s17, 0
      %p63 = por %p61, %p62
      %p64 = scmp.ne.s32.totalorder %s53, %s56
      %p65 = scmp.eq.s32.totalorder %s22, 3
      %p66 = por %p64, %p65
      %p67 = scmp.ne.s32.totalorder %s56, %s57
      %p68 = scmp.eq.s32.totalorder %s22, 0
      %p69 = por %p67, %p68
      %p70 = scmp.ne.s32.totalorder %s56, %s57
      %p71 = scmp.eq.s32.totalorder %s23, 3
      %p72 = por %p70, %p71
      %p74 = scmp.ne.s32.totalorder %s57, %s73
      %p75 = scmp.eq.s32.totalorder %s23, 0
      %p76 = por %p74, %p75
      %s77 = ssub.s32 %s17, %s24
      %p78 = scmp.eq.s32.totalorder %s77, 0
      %s80 = sadd.s32 %s79, 1
      %s81 = scalar_select %p78, %s79, %s80
      %p84 = pneg %p78
      %p85 = scmp.eq.s32.totalorder %s17, 3
      %p86 = por %p84, %p85
      %p87 = scmp.ne.s32.totalorder %s79, %s82
      %p88 = scmp.eq.s32.totalorder %s17, 0
      %p89 = por %p87, %p88
      %p90 = scmp.ne.s32.totalorder %s79, %s82
      %p91 = scmp.eq.s32.totalorder %s22, 3
      %p92 = por %p90, %p91
      %p93 = scmp.ne.s32.totalorder %s82, %s83
      %p94 = scmp.eq.s32.totalorder %s22, 0
      %p95 = por %p93, %p94
      %p96 = scmp.ne.s32.totalorder %s82, %s83
      %p97 = scmp.eq.s32.totalorder %s23, 3
      %p98 = por %p96, %p97
      %p100 = scmp.ne.s32.totalorder %s83, %s99
      %p101 = scmp.eq.s32.totalorder %s23, 0
      %p102 = por %p100, %p101
      %p103 = scmp.le.s32.totalorder 1, %s17
      %p104 = scmp.lt.s32.totalorder %s17, 5
      %p105 = pnand %p103, %p104
      %p106 = pneg %p105
      // Predicated region
      $region9: #{tpu_custom_call.1} parent=5 // pred_check
        _
      $region10: #{tpu_custom_call.1} parent=5 // pred_check_branch
        %108 = sbr.rel (%p105) target = $region12
      $region11: #{tpu_custom_call.1} parent=5 // pred_region
        %s109 = ssub.s32 %s17, 1
      $region12: #{tpu_custom_call.1} parent=5 // pred_fallthru
        _
      %p110 = scmp.lt.s32.totalorder %s17, 4
      // Predicated region
      $region13: #{tpu_custom_call.1} parent=5 // pred_check
        %p111 = pneg %p110
      $region14: #{tpu_custom_call.1} parent=5 // pred_check_branch
        %113 = sbr.rel (%p111) target = $region16
      $region15: #{tpu_custom_call.1} parent=5 // pred_region
        // Predicated region
        $region17: #{tpu_custom_call.1} parent=15 // pred_check
          %p114 = pneg %p37
        $region18: #{tpu_custom_call.1} parent=15 // pred_check_branch
          %116 = sbr.rel (%p114) target = $region20
        $region19: #{tpu_custom_call.1} parent=15 // pred_region
          %s117 = sand.u32 %s27, 1
          %s118 = scalar_lea.sflag [#allocation3], %s117
          %s119 = sand.u32 %s27, 1
          %s120 = smul.addr %s119, 1088
          %s121 = scalar_lea.vmem [#allocation2], %s120
          %s122 = smul.u32 136, %s17
          %s124 = ssub.s32 17408, 17408
          %125 = vsyncadd %s118, %s124
          %s126 = smul.addr %s122, 128
          %s127 = scalar_lea.hbm %s0, %s126
          %s128 = sshll.u32 %s121, 4
          %s129 = int_to_ptr.vmem [resolvable:$true] %s128
          %134 = dma.hbm_to_vmem [thread:$0]  %s127, 17408, %s129, %s118, 128, 128, 8
        $region20: #{tpu_custom_call.1} parent=15 // pred_fallthru
          _
        // Predicated region
        $region21: #{tpu_custom_call.1} parent=15 // pred_check
          %p135 = pneg %p63
        $region22: #{tpu_custom_call.1} parent=15 // pred_check_branch
          %137 = sbr.rel (%p135) target = $region24
        $region23: #{tpu_custom_call.1} parent=15 // pred_region
          %s138 = sand.u32 %s53, 1
          %s139 = scalar_lea.sflag [#allocation6], %s138
          %s140 = sand.u32 %s53, 1
          %s141 = smul.addr %s140, 1088
          %s142 = scalar_lea.vmem [#allocation5], %s141
          %s143 = smul.u32 136, %s17
          %s145 = ssub.s32 17408, 17408
          %146 = vsyncadd %s139, %s145
          %s147 = smul.addr %s143, 128
          %s148 = scalar_lea.hbm %s1, %s147
          %s149 = sshll.u32 %s142, 4
          %s150 = int_to_ptr.vmem [resolvable:$true] %s149
          %155 = dma.hbm_to_vmem [thread:$0]  %s148, 17408, %s150, %s139, 128, 128, 8
        $region24: #{tpu_custom_call.1} parent=15 // pred_fallthru
          _
      $region16: #{tpu_custom_call.1} parent=5 // pred_fallthru
        _
      %p156 = scmp.le.s32.totalorder 1, %s17
      %p157 = scmp.lt.s32.totalorder %s17, 5
      %p158 = pnand %p156, %p157
      %p159 = pneg %p158
      // Predicated region
      $region25: #{tpu_custom_call.1} parent=5 // pred_check
        _
      $region26: #{tpu_custom_call.1} parent=5 // pred_check_branch
        %161 = sbr.rel (%p158) target = $region28
      $region27: #{tpu_custom_call.1} parent=5 // pred_region
        %s162 = ssub.s32 %s17, 1
        %s163 = sand.u32 %s30, 1
        %s164 = scalar_lea.sflag [#allocation3], %s163
        %s165 = sand.u32 %s30, 1
        %s166 = smul.addr %s165, 1088
        %s167 = scalar_lea.vmem [#allocation2], %s166
        // Predicated region
        $region29: #{tpu_custom_call.1} parent=27 // pred_check
          %p168 = pneg %p43
        $region30: #{tpu_custom_call.1} parent=27 // pred_check_branch
          %170 = sbr.rel (%p168) target = $region32
        $region31: #{tpu_custom_call.1} parent=27 // pred_region
          %171 = dma.done %s164, 17408
        $region32: #{tpu_custom_call.1} parent=27 // pred_fallthru
          _
        %s172 = sand.u32 %s56, 1
        %s173 = scalar_lea.sflag [#allocation6], %s172
        %s174 = sand.u32 %s56, 1
        %s175 = smul.addr %s174, 1088
        %s176 = scalar_lea.vmem [#allocation5], %s175
        // Predicated region
        $region33: #{tpu_custom_call.1} parent=27 // pred_check
          %p177 = pneg %p69
        $region34: #{tpu_custom_call.1} parent=27 // pred_check_branch
          %179 = sbr.rel (%p177) target = $region36
        $region35: #{tpu_custom_call.1} parent=27 // pred_region
          %180 = dma.done %s173, 17408
        $region36: #{tpu_custom_call.1} parent=27 // pred_fallthru
          _
        %s181 = sand.u32 %s30, 1
        %s182 = scalar_lea.sflag [#allocation3], %s181
        %s183 = sand.u32 %s30, 1
        %s184 = smul.addr %s183, 1088
        %s185 = scalar_lea.vmem [#allocation2], %s184
        %p186 = pneg %p43
        %p187 = pneg %p40
        %s188 = sand.u32 %s56, 1
        %s189 = scalar_lea.sflag [#allocation6], %s188
        %s190 = sand.u32 %s56, 1
        %s191 = smul.addr %s190, 1088
        %s192 = scalar_lea.vmem [#allocation5], %s191
        %p193 = pneg %p69
        %p194 = pneg %p66
        %p195 = pneg %p95
        %p196 = pneg %p92
        %s197 = sand.u32 %s82, 1
        %s198 = scalar_lea.sflag [#allocation4], %s197
        %s199 = sand.u32 %s82, 1
        %s200 = smul.addr %s199, 16
        %s201 = scalar_lea.vmem [#allocation7], %s200
        %s202 = smul.u32 136, %s22
        %s203 = smul.u32 136, %s22
        loop: start=0, step=1, limit=17
        $region37: #{tpu_custom_call.1} parent=27 // loop_pre_header
          _
        $region38: #{tpu_custom_call.1} parent=27 // loop_header
          %s205 = sphi 0, %s209
          %p206 = scmp.ge.s32.totalorder %s205, 17
          %v210 = vphi 0.0, %v254
          %v211 = vphi 0.0, %v270
        $region39: #{tpu_custom_call.1} parent=27 // loop_header_branch
          %208 = sbr.rel (%p206) target = $region43
        $region40: #{tpu_custom_call.1} parent=27 // loop_body
          %s212 = smul.u32 %s205, 64
          %s213 = scalar_lea.vmem %s167, %s212 [#allocation2]
          %v214 = vld [vmem:[%s213] sm:$0xff]
          %v215 = vld [vmem:[%s213 + $0x8] sm:$0xff]
          %v216 = vld [vmem:[%s213 + $0x10] sm:$0xff]
          %v217 = vld [vmem:[%s213 + $0x18] sm:$0xff]
          %v218 = vld [vmem:[%s213 + $0x20] sm:$0xff]
          %v219 = vld [vmem:[%s213 + $0x28] sm:$0xff]
          %v220 = vld [vmem:[%s213 + $0x30] sm:$0xff]
          %v221 = vld [vmem:[%s213 + $0x38] sm:$0xff]
          %s222 = scalar_lea.vmem %s176, %s212 [#allocation5]
          %v223 = vld [vmem:[%s222] sm:$0xff]
          %v224 = vld [vmem:[%s222 + $0x8] sm:$0xff]
          %v225 = vld [vmem:[%s222 + $0x10] sm:$0xff]
          %v226 = vld [vmem:[%s222 + $0x18] sm:$0xff]
          %v227 = vld [vmem:[%s222 + $0x20] sm:$0xff]
          %v228 = vld [vmem:[%s222 + $0x28] sm:$0xff]
          %v229 = vld [vmem:[%s222 + $0x30] sm:$0xff]
          %v230 = vld [vmem:[%s222 + $0x38] sm:$0xff]
          %v231 = vsub.f32 %v214, %v223
          %v232 = vsub.f32 %v215, %v224
          %v233 = vsub.f32 %v216, %v225
          %v234 = vsub.f32 %v217, %v226
          %v235 = vsub.f32 %v218, %v227
          %v236 = vsub.f32 %v219, %v228
          %v237 = vsub.f32 %v220, %v229
          %v238 = vsub.f32 %v221, %v230
          %v239 = vmul.f32 %v231, %v231
          %v240 = vmul.f32 %v232, %v232
          %v241 = vmul.f32 %v233, %v233
          %v242 = vmul.f32 %v234, %v234
          %v243 = vmul.f32 %v235, %v235
          %v244 = vmul.f32 %v236, %v236
          %v245 = vmul.f32 %v237, %v237
          %v246 = vmul.f32 %v238, %v238
          %v247 = vadd.f32 %v239, %v240
          %v248 = vadd.f32 %v247, %v241
          %v249 = vadd.f32 %v248, %v242
          %v250 = vadd.f32 %v249, %v243
          %v251 = vadd.f32 %v250, %v244
          %v252 = vadd.f32 %v251, %v245
          %v253 = vadd.f32 %v252, %v246
          %v254 = vadd.f32 %v210, %v253
          %v255 = vand.u32 2147483647, %v231
          %v256 = vand.u32 2147483647, %v232
          %v257 = vand.u32 2147483647, %v233
          %v258 = vand.u32 2147483647, %v234
          %v259 = vand.u32 2147483647, %v235
          %v260 = vand.u32 2147483647, %v236
          %v261 = vand.u32 2147483647, %v237
          %v262 = vand.u32 2147483647, %v238
          %v263 = vadd.f32 %v255, %v256
          %v264 = vadd.f32 %v263, %v257
          %v265 = vadd.f32 %v264, %v258
          %v266 = vadd.f32 %v265, %v259
          %v267 = vadd.f32 %v266, %v260
          %v268 = vadd.f32 %v267, %v261
          %v269 = vadd.f32 %v268, %v262
          %v270 = vadd.f32 %v211, %v269
        $region41: #{tpu_custom_call.1} parent=27 // loop_footer
          %s209 = sadd.s32 1, %s205
        $region42: #{tpu_custom_call.1} parent=27 // loop_footer_branch
          %204 = sbr.rel target = $region38
        $region43: #{tpu_custom_call.1} parent=27 // loop_exit
          _
        %271 = vst [vmem:[%s201] sm:$0xff] %v210
        %272 = vst [vmem:[%s201 + $0x8] sm:$0xff] %v211
        %s273 = sand.u32 %s82, 1
        %s274 = scalar_lea.sflag [#allocation4], %s273
        %s275 = sand.u32 %s82, 1
        %s276 = smul.addr %s275, 16
        %s277 = scalar_lea.vmem [#allocation7], %s276
        // Predicated region
        $region44: #{tpu_custom_call.1} parent=27 // pred_check
          %p278 = pneg %p92
        $region45: #{tpu_custom_call.1} parent=27 // pred_check_branch
          %280 = sbr.rel (%p278) target = $region47
        $region46: #{tpu_custom_call.1} parent=27 // pred_region
          %s282 = ssub.s32 256, 256
          %283 = vsyncadd %s274, %s282
          %s284 = smul.addr %s22, 2
          %s285 = smul.addr %s284, 128
          %s286 = scalar_lea.hbm %s2, %s285
          %s287 = sshll.u32 %s277, 4
          %s288 = int_to_ptr.vmem [resolvable:$true] %s287
          %293 = dma.vmem_to_hbm [thread:$0]  %s288, 256, %s286, %s274, 128, 128, 8
        $region47: #{tpu_custom_call.1} parent=27 // pred_fallthru
          _
      $region28: #{tpu_custom_call.1} parent=5 // pred_fallthru
        _
      %p294 = scmp.le.s32.totalorder 2, %s17
      // Predicated region
      $region48: #{tpu_custom_call.1} parent=5 // pred_check
        %p295 = pneg %p294
      $region49: #{tpu_custom_call.1} parent=5 // pred_check_branch
        %297 = sbr.rel (%p295) target = $region51
      $region50: #{tpu_custom_call.1} parent=5 // pred_region
        %s298 = ssub.s32 %s17, 2
        // Predicated region
        $region52: #{tpu_custom_call.1} parent=50 // pred_check
          %p299 = pneg %p98
        $region53: #{tpu_custom_call.1} parent=50 // pred_check_branch
          %301 = sbr.rel (%p299) target = $region55
        $region54: #{tpu_custom_call.1} parent=50 // pred_region
          %s302 = sand.u32 %s83, 1
          %s303 = scalar_lea.sflag [#allocation4], %s302
          %s304 = sand.u32 %s83, 1
          %s305 = smul.addr %s304, 16
          %s306 = scalar_lea.vmem [#allocation7], %s305
          %307 = dma.done %s303, 256
        $region55: #{tpu_custom_call.1} parent=50 // pred_fallthru
          _
      $region51: #{tpu_custom_call.1} parent=5 // pred_fallthru
        _
    $region6: #{tpu_custom_call.1} parent=1 // loop_footer
      %s21 = sadd.s32 1, %s17
    $region7: #{tpu_custom_call.1} parent=1 // loop_footer_branch
      %16 = sbr.rel target = $region3
    $region8: #{tpu_custom_call.1} parent=1 // loop_exit
      _
    %308 = vsyncpa [#allocation3], 1
    %s309 = scalar_lea.sflag [#allocation3], 1
    %310 = vsyncpa %s309, 1
    %311 = vsyncpa [#allocation6], 1
    %s312 = scalar_lea.sflag [#allocation6], 1
    %313 = vsyncpa %s312, 1
    %314 = vsyncpa [#allocation4], 1
    %s315 = scalar_lea.sflag [#allocation4], 1
    %316 = vsyncpa %s315, 1

</llo_original>
